<compile_context>
chip_gen: v6e
topology: v6e:2x2x1
jax: 0.10.0
libtpu: 0.0.40
codegen_flags: <defaults>
</compile_context>

<pallas_src>
import functools

import jax
import jax.numpy as jnp
from jax import lax
from jax.experimental import pallas as pl
from jax.experimental.pallas import tpu as pltpu


def _round_up(x, m):
    return ((x + m - 1) // m) * m


def _device_kind():
    try:
        return jax.devices()[0].device_kind.lower()
    except Exception:
        return ""


# ----------------------------------------------------------------------------
# Quaternion weight construction (matches speechbrain quaternion_linear_op):
# real matrix is (4*in_q, 4*out_q) built from the Hamilton-product block layout.
# ----------------------------------------------------------------------------
def _quaternion_cat(r, i, j, k):
    col_r = jnp.concatenate([r, -i, -j, -k], axis=0)
    col_i = jnp.concatenate([i,  r, -k,  j], axis=0)
    col_j = jnp.concatenate([j,  k,  r, -i], axis=0)
    col_k = jnp.concatenate([k, -j,  i,  r], axis=0)
    return jnp.concatenate([col_r, col_i, col_j, col_k], axis=1)


def _pad_gate_cols(m2d, H, Hl):
    """Re-lay out 4 contiguous H-wide gate blocks into Hl-wide (lane-padded) blocks."""
    if Hl == H:
        return m2d
    blocks = [jnp.pad(m2d[:, g * H:(g + 1) * H], ((0, 0), (0, Hl - H)))
              for g in range(4)]
    return jnp.concatenate(blocks, axis=1)


# ----------------------------------------------------------------------------
# Kernel 1: input projection  w = x @ W + b   (the big parallel matmul).
# bf16 MXU operands (x pre-cast in the wrapper), f32 accumulation, bf16 output.
# ----------------------------------------------------------------------------
def _proj_kernel(x_ref, w_ref, b_ref, o_ref):
    acc = jnp.dot(x_ref[...], w_ref[...], preferred_element_type=jnp.float32)
    o_ref[...] = (acc + b_ref[...]).astype(o_ref.dtype)


def quaternion_linear_proj(x2d, W_bf, bias, *, tm_max=512, tn_max=512,
                           vmem_limit=48 * 1024 * 1024):
    x2d = x2d.astype(jnp.bfloat16)
    W_bf = W_bf.astype(jnp.bfloat16)
    M, F = x2d.shape
    G = W_bf.shape[1]

    tm = min(tm_max, _round_up(M, 8))        # big M tile; no padding waste for tiny M
    M_pad = _round_up(M, tm)

    G128 = _round_up(G, 128)
    if G128 <= tn_max:
        tn, G_pad = G128, G128
    else:
        # pick tn (multiple of 128, <= tn_max) minimizing dead padded columns,
        # preferring the larger tile on ties.
        best_tn, best_pad = None, None
        for k in range(tn_max // 128, 0, -1):
            c = k * 128
            padded = _round_up(G128, c)
            if best_pad is None or padded < best_pad:
                best_tn, best_pad = c, padded
        tn, G_pad = best_tn, best_pad

    if M_pad != M:
        x2d = jnp.pad(x2d, ((0, M_pad - M), (0, 0)))
    if G_pad != G:
        W_bf = jnp.pad(W_bf, ((0, 0), (0, G_pad - G)))
        bias = jnp.pad(bias, ((0, G_pad - G),))

    out = pl.pallas_call(
        _proj_kernel,
        out_shape=jax.ShapeDtypeStruct((M_pad, G_pad), jnp.bfloat16),
        grid_spec=pltpu.PrefetchScalarGridSpec(
            num_scalar_prefetch=0,
            grid=(M_pad // tm, G_pad // tn),
            in_specs=[
                pl.BlockSpec((tm, F), lambda i, j: (i, 0)),
                pl.BlockSpec((F, tn), lambda i, j: (0, j)),
                pl.BlockSpec((1, tn), lambda i, j: (0, j)),
            ],
            out_specs=pl.BlockSpec((tm, tn), lambda i, j: (i, j)),
        ),
        compiler_params=pltpu.CompilerParams(
            dimension_semantics=("parallel", "parallel"),
            vmem_limit_bytes=vmem_limit,
        ),
    )(x2d, W_bf, bias.astype(jnp.float32).reshape(1, G_pad))
    return out[:M, :G]


# ----------------------------------------------------------------------------
# Kernel 2: sequential LSTM recurrence.
# Grid = (directions, time-chunks); direction axis is "parallel" (dual-TC on
# v7x), time axis "arbitrary" with hidden/cell state carried in VMEM scratch.
# w chunks arrive in bf16 (time-major), output is written directly in
# (B, T, Hl) layout. bias_u is pre-folded into the projection bias.
# ----------------------------------------------------------------------------
def _qlstm_cell_kernel(Hl, Tc, w_ref, u_ref, h0_ref, h_out_ref, ht_sc, ct_sc):
    @pl.when(pl.program_id(1) == 0)
    def _init():
        ht_sc[...] = h0_ref[...]
        ct_sc[...] = jnp.zeros_like(ct_sc)   # ct starts at h_init (zeros buffer)

    # Fully-unrolled static time loop: every gate slice / store offset is a
    # compile-time constant (lane- and sublane-dense for Hl multiple of 128).
    for t in range(Tc):
        ht_bf = ht_sc[...].astype(jnp.bfloat16)
        wt = w_ref[t]                                   # (B, 4*Hl) bf16

        def gate_pre(g):
            # Per-gate (B,Hl)x(Hl,Hl) dot, U sliced directly from its ref —
            # keeps live values at (B,Hl) instead of (B,4*Hl).
            return (wt[:, g * Hl:(g + 1) * Hl].astype(jnp.float32)
                    + jnp.dot(ht_bf, u_ref[:, g * Hl:(g + 1) * Hl],
                              preferred_element_type=jnp.float32))

        it = jax.nn.sigmoid(gate_pre(0))
        ft = jax.nn.sigmoid(gate_pre(1))
        ot = jax.nn.sigmoid(gate_pre(2))
        cand = jnp.tanh(gate_pre(3))
        # eval mode: drop_mask == 1.0 (drop_mask_te)
        ct = it * cand + ft * ct_sc[...]
        ht = ot * jnp.tanh(ct)
        ct_sc[...] = ct
        ht_sc[...] = ht
        h_out_ref[:, t:t + 1, :] = ht[:, None, :]       # (B, 1, Hl) in-block store


def qlstm_recurrence(w_seq, U_bf, h0, *, tc=16, vmem_limit=48 * 1024 * 1024):
    D, T, B, G = w_seq.shape       # (directions, time, padded batch, 4*Hl) bf16
    Hl = h0.shape[-1]

    Tc = min(tc, T)
    if Tc < T:
        Tc = max(8, (Tc // 8) * 8)  # keep the out block sublane-aligned
    T_pad = _round_up(T, Tc)
    if T_pad != T:
        w_seq = jnp.pad(w_seq, ((0, 0), (0, T_pad - T), (0, 0), (0, 0)))

    def build(single_buffer_u):
        # NOTE: bump the w spec to pipeline_mode=pl.Buffered(3) if the w-chunk
        # DMA shows as exposed latency on very long sequences.
        u_kwargs = {"pipeline_mode": pl.Buffered(1)} if single_buffer_u else {}
        return pl.pallas_call(
            functools.partial(_qlstm_cell_kernel, Hl, Tc),
            out_shape=jax.ShapeDtypeStruct((D, B, T_pad, Hl), jnp.float32),
            grid_spec=pltpu.PrefetchScalarGridSpec(
                num_scalar_prefetch=0,
                grid=(D, T_pad // Tc),
                in_specs=[
                    pl.BlockSpec((None, Tc, B, G), lambda d, c: (d, c, 0, 0)),
                    pl.BlockSpec((Hl, G), lambda d, c: (0, 0), **u_kwargs),
                    pl.BlockSpec((None, B, Hl), lambda d, c: (d, 0, 0)),
                ],
                out_specs=pl.BlockSpec((None, B, Tc, Hl),
                                       lambda d, c: (d, 0, c, 0)),
                scratch_shapes=[
                    pltpu.VMEM((B, Hl), jnp.float32),   # ht carry
                    pltpu.VMEM((B, Hl), jnp.float32),   # ct carry
                ],
            ),
            compiler_params=pltpu.CompilerParams(
                dimension_semantics=("parallel", "arbitrary"),
                vmem_limit_bytes=vmem_limit,
            ),
        )

    try:
        h = build(True)(w_seq, U_bf, h0)
    except Exception:
        # Fallback if this JAX version rejects pipeline_mode / Buffered(1).
        h = build(False)(w_seq, U_bf, h0)
    return h[:, :, :T, :]


# ----------------------------------------------------------------------------
# QLSTM_Layer equivalent
# ----------------------------------------------------------------------------
class QLSTMLayerPallas:
    def __init__(self, input_size, hidden_size, num_layers, batch_size,
                 dropout=0.0, bidirectional=False, key=None):
        self.quat_hidden = int(hidden_size) // 4
        self.H = self.quat_hidden * 4          # real hidden size per direction
        self.G = 4 * self.H                    # stacked i/f/o/c gates (real)
        self.input_size = int(input_size)
        self.bidirectional = bidirectional
        self.dropout = dropout                 # TODO(synk): training dropout unused
        self.num_layers = num_layers
        self.batch_size = batch_size

        # Lane-pad each gate block to 128 columns for small models (H < 128):
        # keeps every per-step gate slice / state op lane-dense.
        self.Hl = _round_up(self.H, 128) if self.H < 128 else self.H
        self.Gl = 4 * self.Hl

        # Deterministic synthetic init (stand-in for quaternion glorot init).
        key = jax.random.PRNGKey(0) if key is None else key
        ks = jax.random.split(key, 10)
        in_q, out_q, hid_q = self.input_size // 4, self.G // 4, self.H // 4
        sw = 1.0 / jnp.sqrt(jnp.float32(in_q + out_q))
        su = 1.0 / jnp.sqrt(jnp.float32(hid_q + out_q))
        wr, wi, wj, wk = (sw * jax.random.normal(ks[n], (in_q, out_q), jnp.float32)
                          for n in range(4))
        ur, ui, uj, uk = (su * jax.random.normal(ks[4 + n], (hid_q, out_q), jnp.float32)
                          for n in range(4))
        self.W = _quaternion_cat(wr, wi, wj, wk)   # (input_size, G) f32 master
        self.U = _quaternion_cat(ur, ui, uj, uk)   # (H, G) f32 master
        self.bw = 0.1 * jax.random.normal(ks[8], (self.G,), jnp.float32)
        self.bu = 0.1 * jax.random.normal(ks[9], (self.G,), jnp.float32)
        b_fold = self.bw + self.bu                 # bias_u folded into the projection

        # Lane-padded bf16 MXU operands (gate math stays in f32 in-kernel).
        W_lane = _pad_gate_cols(self.W, self.H, self.Hl)
        U_lane = _pad_gate_cols(self.U, self.H, self.Hl)
        U_lane = jnp.pad(U_lane, ((0, self.Hl - self.H), (0, 0)))
        self.W_lane_bf = W_lane.astype(jnp.bfloat16)           # (F, Gl)
        self.U_lane_bf = U_lane.astype(jnp.bfloat16)           # (Hl, Gl)
        self.b_lane = _pad_gate_cols(b_fold[None, :], self.H, self.Hl)[0]  # (Gl,) f32

        kind = _device_kind()
        self._is_v7 = "v7" in kind
        self._vmem_limit = (48 if self._is_v7 else 96) * 1024 * 1024
        self._tm_max = 512 if self._is_v7 else 1024
        self._tn_max = 512 if self._is_v7 else 1024

    def _make_h0(self, hx, D, Bb, B_pad):
        H, Hl = self.H, self.Hl
        if hx is None:
            return jnp.zeros((D, B_pad, Hl), jnp.float32)
        hx2 = jnp.asarray(hx, jnp.float32).reshape(-1, H)
        rows = hx2.shape[0]
        if rows == 1:
            h0 = jnp.broadcast_to(hx2, (D * Bb, H))
        elif rows == D * Bb:
            h0 = hx2
        elif rows == Bb:
            h0 = jnp.tile(hx2, (D, 1))
        else:
            raise ValueError(f"hx has {rows} rows; expected 1, {Bb} or {D * Bb}")
        h0 = h0.reshape(D, Bb, H)
        return jnp.pad(h0, ((0, 0), (0, B_pad - Bb), (0, Hl - H)))

    def __call__(self, x, hx=None, *, tc=16, split_directions=None):
        B0, T, F = x.shape
        if self.bidirectional:
            if split_directions is None:
                # v7x: run fwd/bwd on separate TensorCores via the parallel
                # direction grid axis; single-TC chips keep the batch concat.
                split_directions = self._is_v7
            x_flip = jnp.flip(x, axis=1)
            if split_directions:
                x_dirs = jnp.stack([x, x_flip], axis=0)                 # (2, B0, T, F)
            else:
                x_dirs = jnp.concatenate([x, x_flip], axis=0)[None]     # (1, 2B0, T, F)
        else:
            split_directions = False
            x_dirs = x[None]                                            # (1, B0, T, F)

        D, Bb = x_dirs.shape[0], x_dirs.shape[1]
        B_pad = _round_up(Bb, 8)                # f32 sublane multiple

        # Pre-cast to bf16 (halves x DMA) and go time-major once (x is much
        # smaller than w_seq, so transposing here is the cheap direction).
        x_tb = jnp.transpose(x_dirs.astype(jnp.bfloat16), (0, 2, 1, 3))  # (D,T,Bb,F)
        if B_pad != Bb:
            x_tb = jnp.pad(x_tb, ((0, 0), (0, 0), (0, B_pad - Bb), (0, 0)))

        w_seq = quaternion_linear_proj(
            x_tb.reshape(D * T * B_pad, F), self.W_lane_bf, self.b_lane,
            tm_max=self._tm_max, tn_max=self._tn_max, vmem_limit=self._vmem_limit,
        ).reshape(D, T, B_pad, self.Gl)                                  # bf16

        h0 = self._make_h0(hx, D, Bb, B_pad)
        h_all = qlstm_recurrence(w_seq, self.U_lane_bf, h0, tc=tc,
                                 vmem_limit=self._vmem_limit)            # (D,B_pad,T,Hl)
        h_all = h_all[:, :Bb, :, :self.H]

        if self.bidirectional:
            if split_directions:
                h = jnp.concatenate([h_all[0], jnp.flip(h_all[1], axis=1)], axis=2)
            else:
                h_f, h_b = jnp.split(h_all[0], 2, axis=0)
                h = jnp.concatenate([h_f, jnp.flip(h_b, axis=1)], axis=2)
        else:
            h = h_all[0]
        return h


# ----------------------------------------------------------------------------
# Pure-JAX reference (mirrors the PyTorch forward with the kernel's bf16-MXU /
# bf16-w_seq / f32-gate-math precision choices) for a tight correctness check.
# NOTE: drift vs a true f32 PyTorch reference grows with sequence length.
# ----------------------------------------------------------------------------
def qlstm_ref(x, layer, hx=None):
    if layer.bidirectional:
        x = jnp.concatenate([x, jnp.flip(x, axis=1)], axis=0)
    B, T, F = x.shape
    H = layer.H
    bias = layer.bw + layer.bu
    W_bf = layer.W.astype(jnp.bfloat16)
    U_bf = layer.U.astype(jnp.bfloat16)
    w = (jnp.dot(x.reshape(B * T, F).astype(jnp.bfloat16), W_bf,
                 preferred_element_type=jnp.float32) + bias).astype(jnp.bfloat16)
    w = w.reshape(B, T, layer.G)
    if hx is None:
        ht = jnp.zeros((B, H), jnp.float32)
    else:
        ht = jnp.broadcast_to(jnp.asarray(hx, jnp.float32).reshape(-1, H), (B, H))
    ct = jnp.zeros((B, H), jnp.float32)

    def step(carry, wt):
        ht, ct = carry
        gates = wt.astype(jnp.float32) + jnp.dot(ht.astype(jnp.bfloat16), U_bf,
                                                 preferred_element_type=jnp.float32)
        it = jax.nn.sigmoid(gates[:, :H])
        ft = jax.nn.sigmoid(gates[:, H:2 * H])
        ot = jax.nn.sigmoid(gates[:, 2 * H:3 * H])
        cand = jnp.tanh(gates[:, 3 * H:])
        ct = it * cand + ft * ct
        ht = ot * jnp.tanh(ct)
        return (ht, ct), ht

    _, hs = lax.scan(step, (ht, ct), jnp.transpose(w, (1, 0, 2)))
    h = jnp.transpose(hs, (1, 0, 2))
    if layer.bidirectional:
        h_f, h_b = jnp.split(h, 2, axis=0)
        h = jnp.concatenate([h_f, jnp.flip(h_b, axis=1)], axis=2)
    return h


if __name__ == "__main__":
    B, T, input_size, hidden_size = 2, 8, 32, 32
    key = jax.random.PRNGKey(0)
    kx, kp = jax.random.split(key)
    x = jax.random.normal(kx, (B, T, input_size), jnp.float32)

    # Unidirectional
    layer = QLSTMLayerPallas(input_size, hidden_size, num_layers=1,
                             batch_size=B, dropout=0.0, bidirectional=False,
                             key=kp)
    h = jax.block_until_ready(layer(x))
    assert h.shape == (B, T, layer.H), h.shape
    ref = jax.block_until_ready(qlstm_ref(x, layer))
    err = float(jnp.max(jnp.abs(h - ref)))
    assert jnp.allclose(h, ref, rtol=5e-3, atol=5e-3), f"max abs err {err}"

    # Bidirectional
    layer_bi = QLSTMLayerPallas(input_size, hidden_size, num_layers=1,
                                batch_size=B, dropout=0.0, bidirectional=True,
                                key=kp)
    h_bi = jax.block_until_ready(layer_bi(x))
    assert h_bi.shape == (B, T, 2 * layer_bi.H), h_bi.shape
    ref_bi = jax.block_until_ready(qlstm_ref(x, layer_bi))
    err_bi = float(jnp.max(jnp.abs(h_bi - ref_bi)))
    assert jnp.allclose(h_bi, ref_bi, rtol=5e-3, atol=5e-3), f"max abs err {err_bi}"

    print("KERNEL_OK")
</pallas_src>

<mosaic_0001>
module attributes {stable_mosaic.version = 11 : i64} {
  func.func @_proj_kernel(%arg0: i32, %arg1: i32, %arg2: memref<64x32xbf16, #tpu.memory_space<vmem>>, %arg3: memref<32x512xbf16, #tpu.memory_space<vmem>>, %arg4: memref<1x512xf32, #tpu.memory_space<vmem>>, %arg5: memref<64x512xbf16, #tpu.memory_space<vmem>>) attributes {dimension_semantics = [#tpu.dimension_semantics<parallel>, #tpu.dimension_semantics<parallel>], iteration_bounds = array<i64: 1, 1>, scalar_prefetch = 0 : i64, scratch_operands = 0 : i64, tpu.core_type = #tpu.core_type<tc>, window_params = [{transform_indices = @transform_0, window_bounds = array<i64: 64, 32>}, {transform_indices = @transform_1, window_bounds = array<i64: 32, 512>}, {transform_indices = @transform_2, window_bounds = array<i64: 1, 512>}, {transform_indices = @transform_3, window_bounds = array<i64: 64, 512>}]} {
    %c0 = arith.constant 0 : index
    %c0_0 = arith.constant 0 : index
    %0 = vector.load %arg2[%c0, %c0_0] : memref<64x32xbf16, #tpu.memory_space<vmem>>, vector<64x32xbf16>
    %c0_1 = arith.constant 0 : index
    %c0_2 = arith.constant 0 : index
    %1 = vector.load %arg3[%c0_1, %c0_2] : memref<32x512xbf16, #tpu.memory_space<vmem>>, vector<32x512xbf16>
    %cst = arith.constant dense<0.000000e+00> : vector<64x512xf32>
    %2 = tpu.matmul %0, %1, %cst {dimension_numbers = #tpu.dot_dimension_numbers<[1], [0], [0], [1], [0, 0, 1, 1], [], []>} : vector<64x32xbf16>, vector<32x512xbf16>, vector<64x512xf32> -> vector<64x512xf32>
    %c0_3 = arith.constant 0 : index
    %c0_4 = arith.constant 0 : index
    %3 = vector.load %arg4[%c0_3, %c0_4] : memref<1x512xf32, #tpu.memory_space<vmem>>, vector<1x512xf32>
    %4 = vector.broadcast %3 : vector<1x512xf32> to vector<64x512xf32>
    %5 = arith.addf %2, %4 : vector<64x512xf32>
    %6 = arith.truncf %5 : vector<64x512xf32> to vector<64x512xbf16>
    %c0_5 = arith.constant 0 : index
    %c0_6 = arith.constant 0 : index
    %7 = vector.load %arg5[%c0_5, %c0_6] : memref<64x512xbf16, #tpu.memory_space<vmem>>, vector<64x512xbf16>
    tpu.vector_store %arg5[%c0_5, %c0_6], %6 {strides = array<i32>} : memref<64x512xbf16, #tpu.memory_space<vmem>>, vector<64x512xbf16>,
    return
  }
  func.func @transform_0(%arg0: i32, %arg1: i32) -> (i32, i32) {
    %c0_i32 = arith.constant 0 : i32
    %c0_i32_0 = arith.constant 0 : i32
    return %arg0, %c0_i32 : i32, i32
  }
  func.func @transform_1(%arg0: i32, %arg1: i32) -> (i32, i32) {
    %c0_i32 = arith.constant 0 : i32
    %c0_i32_0 = arith.constant 0 : i32
    return %c0_i32, %arg1 : i32, i32
  }
  func.func @transform_2(%arg0: i32, %arg1: i32) -> (i32, i32) {
    %c0_i32 = arith.constant 0 : i32
    %c0_i32_0 = arith.constant 0 : i32
    return %c0_i32, %arg1 : i32, i32
  }
  func.func @transform_3(%arg0: i32, %arg1: i32) -> (i32, i32) {
    %c0_i32 = arith.constant 0 : i32
    return %arg0, %arg1 : i32, i32
  }
}

</mosaic_0001>

<llo_original>
// kernel: tpu_custom_call.1
$region0: #{tpu_custom_call.1}
  #allocation0 [shape = 'u32[]', space=smem, size = 0x4, offset = 0x4, fixed_abs, tag = 'smem constant byte address 0x4 - core index']
  #allocation1 [shape = 'u32[144,128]{1,0:T(1,128)}', space=vmem, size = 0x12000, scoped, tag = 'internal scratch']
  %s0 = inlined_call_operand.vmem [shape: bf16[64,32], index: 0, kind: input, shape index: {}]
  %s1 = inlined_call_operand.hbm [shape: bf16[32,512], index: 1, kind: input, shape index: {}]
  %s2 = inlined_call_operand.vmem [shape: f32[1,512], index: 2, kind: input, shape index: {}]
  %s3 = inlined_call_operand.hbm [shape: bf16[64,512], index: 3, kind: output, shape index: {}]
  %s4 = sld [smem:[#allocation0]]
  $region26: #{tpu_custom_call.1} parent=0
    _
  %s6 = ssub.s32 1, %s4
  %s7 = scalar_select 0, %s6, %s4
  $region1: #{tpu_custom_call.1} parent=0
    #allocation2 [shape = 'u8[32768]{0}', space=vmem, size = 0x8000, scoped, tag = 'input window, operand 1, single buffered']
    #allocation3 [shape = 's32[1]{0}', space=sflag, size = 0x4, scoped, tag = 'scoped memory for tpu_custom_call.1']
    #allocation4 [shape = 's32[1]{0}', space=sflag, size = 0x4, scoped, tag = 'scoped memory for tpu_custom_call.1']
    #allocation5 [shape = 'u8[65536]{0}', space=vmem, size = 0x10000, scoped, tag = 'output window, operand 0, single buffered']
    %8 = vsyncpa [#allocation3], 0
    %9 = vsyncpa [#allocation4], 0
    // Predicated region
    $region2: #{tpu_custom_call.1} parent=1 // pred_check
      _
    $region3: #{tpu_custom_call.1} parent=1 // pred_check_branch
      %11 = sbr.rel (0) target = $region5
    $region4: #{tpu_custom_call.1} parent=1 // pred_region
      _
    $region5: #{tpu_custom_call.1} parent=1 // pred_fallthru
      _
    // Predicated region
    $region6: #{tpu_custom_call.1} parent=1 // pred_check
      _
    $region7: #{tpu_custom_call.1} parent=1 // pred_check_branch
      %13 = sbr.rel (0) target = $region9
    $region8: #{tpu_custom_call.1} parent=1 // pred_region
      %s15 = ssub.s32 1024, 1024
      %16 = vsyncadd [#allocation3], %s15
      %s17 = sshll.u32 [#allocation2], 4
      %s18 = int_to_ptr.vmem [resolvable:$true] %s17
      %23 = dma.hbm_to_vmem [thread:$0]  %s1, 1024, %s18, [#allocation3], 256, 256, 16
    $region9: #{tpu_custom_call.1} parent=1 // pred_fallthru
      _
    // Predicated region
    $region10: #{tpu_custom_call.1} parent=1 // pred_check
      _
    $region11: #{tpu_custom_call.1} parent=1 // pred_check_branch
      %25 = sbr.rel (0) target = $region13
    $region12: #{tpu_custom_call.1} parent=1 // pred_region
      _
    $region13: #{tpu_custom_call.1} parent=1 // pred_fallthru
      _
    // Predicated region
    $region14: #{tpu_custom_call.1} parent=1 // pred_check
      _
    $region15: #{tpu_custom_call.1} parent=1 // pred_check_branch
      %27 = sbr.rel (0) target = $region17
    $region16: #{tpu_custom_call.1} parent=1 // pred_region
      %28 = dma.done [#allocation3], 1024
    $region17: #{tpu_custom_call.1} parent=1 // pred_fallthru
      _
    %v30 = vld [vmem:[%s0] sm:$0xf]
    %v31 = vld [vmem:[%s0 + $0x4] sm:$0xf]
    %v32 = vld [vmem:[%s0 + $0x8] sm:$0xf]
    %v33 = vld [vmem:[%s0 + $0xc] sm:$0xf]
    %v34 = vld [vmem:[%s0 + $0x10] sm:$0xf]
    %v35 = vld [vmem:[%s0 + $0x14] sm:$0xf]
    %v36 = vld [vmem:[%s0 + $0x18] sm:$0xf]
    %v37 = vld [vmem:[%s0 + $0x1c] sm:$0xf]
    %v38 = vld [vmem:[#allocation2] sm:$0xff]
    %v39 = vld [vmem:[#allocation2 + $0x8] sm:$0xff]
    %v40 = vld [vmem:[#allocation2 + $0x10] sm:$0xff]
    %v41 = vld [vmem:[#allocation2 + $0x18] sm:$0xff]
    %v42 = vld [vmem:[#allocation2 + $0x20] sm:$0xff]
    %v43 = vld [vmem:[#allocation2 + $0x28] sm:$0xff]
    %v44 = vld [vmem:[#allocation2 + $0x30] sm:$0xff]
    %v45 = vld [vmem:[#allocation2 + $0x38] sm:$0xff]
    %v46 = vld [vmem:[%s2] sm:$0xf]
    %v48 = vlaneseq
    %v49 = vshrl.u32 %v48, 7
    %v50 = vsub.s32 0, %v49
    %v51 = vrot.slane %v46, %v50
    %v52 = vlaneseq
    %v53 = vshrl.u32 %v52, 7
    %v54 = vsub.s32 1, %v53
    %v55 = vrot.slane %v46, %v54
    %v56 = vlaneseq
    %v57 = vshrl.u32 %v56, 7
    %v58 = vsub.s32 2, %v57
    %v59 = vrot.slane %v46, %v58
    %v60 = vlaneseq
    %v61 = vshrl.u32 %v60, 7
    %v62 = vsub.s32 3, %v61
    %v63 = vrot.slane %v46, %v62
    %v76 = vunpack.c.l.b16 %v30
    %v77 = vunpack.c.l.b16 %v31
    %v78 = vunpack.c.l.b16 %v32
    %v79 = vunpack.c.l.b16 %v33
    %v80 = vunpack.c.l.b16 %v34
    %v81 = vunpack.c.l.b16 %v35
    %v82 = vunpack.c.l.b16 %v36
    %v83 = vunpack.c.l.b16 %v37
    %v84 = vpack.c.b16 %v77, %v76
    %v85 = vpack.c.b16 %v79, %v78
    %v86 = vpack.c.b16 %v81, %v80
    %v87 = vpack.c.b16 %v83, %v82
    %v96 = vunpack.c.l.b16 %v38
    %v97 = vunpack.c.h.b16 %v38
    %v98 = vunpack.c.l.b16 %v39
    %v99 = vunpack.c.h.b16 %v39
    %v100 = vunpack.c.l.b16 %v40
    %v101 = vunpack.c.h.b16 %v40
    %v102 = vunpack.c.l.b16 %v41
    %v103 = vunpack.c.h.b16 %v41
    %v104 = vunpack.c.l.b16 %v42
    %v105 = vunpack.c.h.b16 %v42
    %v106 = vunpack.c.l.b16 %v43
    %v107 = vunpack.c.h.b16 %v43
    %v108 = vunpack.c.l.b16 %v44
    %v109 = vunpack.c.h.b16 %v44
    %v110 = vunpack.c.l.b16 %v45
    %v111 = vunpack.c.h.b16 %v45
    %v112 = vpack.c.b16 %v100, %v96
    %v113 = vpack.c.b16 %v101, %v97
    %v114 = vpack.c.b16 %v102, %v98
    %v115 = vpack.c.b16 %v103, %v99
    %v116 = vpack.c.b16 %v108, %v104
    %v117 = vpack.c.b16 %v109, %v105
    %v118 = vpack.c.b16 %v110, %v106
    %v119 = vpack.c.b16 %v111, %v107
    %vm128 = vcmask 261120
    %v130 = vsel %vm128, %v84, 0
    %v133 = vsel %vm128, %v85, 0
    %v136 = vsel %vm128, %v86, 0
    %v139 = vsel %vm128, %v87, 0
    %141 = vmatprep.subr.bf16.mxu0 0
    %142 = vmatpush1.bf16.msra.mxu0 0
    %143 = vmatprep.subr.bf16.mxu0 0
    %144 = vmatpush1.bf16.msra.mxu0 0
    %145 = vmatprep.subr.bf16.mxu0 0
    %146 = vmatpush1.bf16.msra.mxu0 0
    %147 = vmatprep.subr.bf16.mxu0 0
    %148 = vmatpush1.bf16.msra.mxu0 0
    %149 = vmatprep.subr.bf16.mxu0 0
    %150 = vmatpush1.bf16.msra.mxu0 0
    %151 = vmatprep.subr.bf16.mxu0 0
    %152 = vmatpush1.bf16.msra.mxu0 0
    %153 = vmatprep.subr.bf16.mxu0 %v117
    %154 = vmatpush1.bf16.msra.mxu0 %v116
    %155 = vmatprep.subr.bf16.mxu0 %v113
    %156 = vmatpush1.bf16.msra.mxu0 %v112
    %157 = vmatprep.subr.bf16.mxu0 0
    %158 = vmatpush2.bf16.msra.mxu0 0
    %159 = vmatprep.subr.bf16.mxu0 0
    %160 = vmatpush2.bf16.msra.mxu0 0
    %161 = vmatprep.subr.bf16.mxu0 0
    %162 = vmatpush2.bf16.msra.mxu0 0
    %163 = vmatprep.subr.bf16.mxu0 0
    %164 = vmatpush2.bf16.msra.mxu0 0
    %165 = vmatprep.subr.bf16.mxu0 0
    %166 = vmatpush2.bf16.msra.mxu0 0
    %167 = vmatprep.subr.bf16.mxu0 0
    %168 = vmatpush2.bf16.msra.mxu0 0
    %169 = vmatprep.subr.bf16.mxu0 0
    %170 = vmatpush2.bf16.msra.mxu0 0
    %171 = vmatprep.subr.bf16.mxu0 0
    %172 = vmatpush2.bf16.msra.mxu0 0
    %173 = vmatprep.mubr.bf16.mxu0 0
    %174 = vmatmul.mubr.bf16.gmra.mxu0 %v130
    %v175 = vpop.f32.mrf.mxu0
    %v176 = vadd.f32 %v51, %v175
    %v177 = vpop.f32.mrf.mxu0
    %v178 = vadd.f32 %v55, %v177
    %v179 = vpop.f32.mrf.mxu0
    %v180 = vadd.f32 %v51, %v179
    %v181 = vpop.f32.mrf.mxu0
    %v182 = vadd.f32 %v55, %v181
    %183 = vmatprep.mubr.bf16.mxu0 0
    %184 = vmatmul.mubr.bf16.gmra.mxu0 %v133
    %v185 = vpop.f32.mrf.mxu0
    %v186 = vadd.f32 %v51, %v185
    %v187 = vpop.f32.mrf.mxu0
    %v188 = vadd.f32 %v55, %v187
    %v189 = vpop.f32.mrf.mxu0
    %v190 = vadd.f32 %v51, %v189
    %v191 = vpop.f32.mrf.mxu0
    %v192 = vadd.f32 %v55, %v191
    %193 = vmatprep.mubr.bf16.mxu0 0
    %194 = vmatmul.mubr.bf16.gmra.mxu0 %v136
    %v195 = vpop.f32.mrf.mxu0
    %v196 = vadd.f32 %v51, %v195
    %v197 = vpop.f32.mrf.mxu0
    %v198 = vadd.f32 %v55, %v197
    %v199 = vpop.f32.mrf.mxu0
    %v200 = vadd.f32 %v51, %v199
    %v201 = vpop.f32.mrf.mxu0
    %v202 = vadd.f32 %v55, %v201
    %203 = vmatprep.mubr.bf16.mxu0 0
    %204 = vmatmul.mubr.bf16.gmra.mxu0 %v139
    %v205 = vpop.f32.mrf.mxu0
    %v206 = vadd.f32 %v51, %v205
    %v207 = vpop.f32.mrf.mxu0
    %v208 = vadd.f32 %v55, %v207
    %v209 = vpop.f32.mrf.mxu0
    %v210 = vadd.f32 %v51, %v209
    %v211 = vpop.f32.mrf.mxu0
    %v212 = vadd.f32 %v55, %v211
    %213 = vdwg.mxu0
    %214 = vmatprep.subr.bf16.mxu0 0
    %215 = vmatpush1.bf16.msra.mxu0 0
    %216 = vmatprep.subr.bf16.mxu0 0
    %217 = vmatpush1.bf16.msra.mxu0 0
    %218 = vmatprep.subr.bf16.mxu0 0
    %219 = vmatpush1.bf16.msra.mxu0 0
    %220 = vmatprep.subr.bf16.mxu0 0
    %221 = vmatpush1.bf16.msra.mxu0 0
    %222 = vmatprep.subr.bf16.mxu0 0
    %223 = vmatpush1.bf16.msra.mxu0 0
    %224 = vmatprep.subr.bf16.mxu0 0
    %225 = vmatpush1.bf16.msra.mxu0 0
    %226 = vmatprep.subr.bf16.mxu0 %v119
    %227 = vmatpush1.bf16.msra.mxu0 %v118
    %228 = vmatprep.subr.bf16.mxu0 %v115
    %229 = vmatpush1.bf16.msra.mxu0 %v114
    %230 = vmatprep.subr.bf16.mxu0 0
    %231 = vmatpush2.bf16.msra.mxu0 0
    %232 = vmatprep.subr.bf16.mxu0 0
    %233 = vmatpush2.bf16.msra.mxu0 0
    %234 = vmatprep.subr.bf16.mxu0 0
    %235 = vmatpush2.bf16.msra.mxu0 0
    %236 = vmatprep.subr.bf16.mxu0 0
    %237 = vmatpush2.bf16.msra.mxu0 0
    %238 = vmatprep.subr.bf16.mxu0 0
    %239 = vmatpush2.bf16.msra.mxu0 0
    %240 = vmatprep.subr.bf16.mxu0 0
    %241 = vmatpush2.bf16.msra.mxu0 0
    %242 = vmatprep.subr.bf16.mxu0 0
    %243 = vmatpush2.bf16.msra.mxu0 0
    %244 = vmatprep.subr.bf16.mxu0 0
    %245 = vmatpush2.bf16.msra.mxu0 0
    %246 = vmatprep.mubr.bf16.mxu0 0
    %247 = vmatmul.mubr.bf16.gmra.mxu0 %v130
    %v248 = vpop.f32.mrf.mxu0
    %v249 = vadd.f32 %v59, %v248
    %v250 = vpop.f32.mrf.mxu0
    %v251 = vadd.f32 %v63, %v250
    %v252 = vpop.f32.mrf.mxu0
    %v253 = vadd.f32 %v59, %v252
    %v254 = vpop.f32.mrf.mxu0
    %v255 = vadd.f32 %v63, %v254
    %256 = vmatprep.mubr.bf16.mxu0 0
    %257 = vmatmul.mubr.bf16.gmra.mxu0 %v133
    %v258 = vpop.f32.mrf.mxu0
    %v259 = vadd.f32 %v59, %v258
    %v260 = vpop.f32.mrf.mxu0
    %v261 = vadd.f32 %v63, %v260
    %v262 = vpop.f32.mrf.mxu0
    %v263 = vadd.f32 %v59, %v262
    %v264 = vpop.f32.mrf.mxu0
    %v265 = vadd.f32 %v63, %v264
    %266 = vmatprep.mubr.bf16.mxu0 0
    %267 = vmatmul.mubr.bf16.gmra.mxu0 %v136
    %v268 = vpop.f32.mrf.mxu0
    %v269 = vadd.f32 %v59, %v268
    %v270 = vpop.f32.mrf.mxu0
    %v271 = vadd.f32 %v63, %v270
    %v272 = vpop.f32.mrf.mxu0
    %v273 = vadd.f32 %v59, %v272
    %v274 = vpop.f32.mrf.mxu0
    %v275 = vadd.f32 %v63, %v274
    %276 = vmatprep.mubr.bf16.mxu0 0
    %277 = vmatmul.mubr.bf16.gmra.mxu0 %v139
    %v278 = vpop.f32.mrf.mxu0
    %v279 = vadd.f32 %v59, %v278
    %v280 = vpop.f32.mrf.mxu0
    %v281 = vadd.f32 %v63, %v280
    %v282 = vpop.f32.mrf.mxu0
    %v283 = vadd.f32 %v59, %v282
    %v284 = vpop.f32.mrf.mxu0
    %v285 = vadd.f32 %v63, %v284
    %286 = vdwg.mxu0
    %v287 = vpack.c.bf16 %v180, %v176
    %v288 = vpack.c.bf16 %v182, %v178
    %v289 = vpack.c.bf16 %v253, %v249
    %v290 = vpack.c.bf16 %v255, %v251
    %v291 = vpack.c.bf16 %v190, %v186
    %v292 = vpack.c.bf16 %v192, %v188
    %v293 = vpack.c.bf16 %v263, %v259
    %v294 = vpack.c.bf16 %v265, %v261
    %v295 = vpack.c.bf16 %v200, %v196
    %v296 = vpack.c.bf16 %v202, %v198
    %v297 = vpack.c.bf16 %v273, %v269
    %v298 = vpack.c.bf16 %v275, %v271
    %v299 = vpack.c.bf16 %v210, %v206
    %v300 = vpack.c.bf16 %v212, %v208
    %v301 = vpack.c.bf16 %v283, %v279
    %v302 = vpack.c.bf16 %v285, %v281
    %v319 = vunpack.c.l.b16 %v287
    %v320 = vunpack.c.l.b16 %v288
    %v321 = vunpack.c.l.b16 %v289
    %v322 = vunpack.c.l.b16 %v290
    %v323 = vunpack.c.h.b16 %v287
    %v324 = vunpack.c.h.b16 %v288
    %v325 = vunpack.c.h.b16 %v289
    %v326 = vunpack.c.h.b16 %v290
    %v327 = vunpack.c.l.b16 %v291
    %v328 = vunpack.c.l.b16 %v292
    %v329 = vunpack.c.l.b16 %v293
    %v330 = vunpack.c.l.b16 %v294
    %v331 = vunpack.c.h.b16 %v291
    %v332 = vunpack.c.h.b16 %v292
    %v333 = vunpack.c.h.b16 %v293
    %v334 = vunpack.c.h.b16 %v294
    %v335 = vunpack.c.l.b16 %v295
    %v336 = vunpack.c.l.b16 %v296
    %v337 = vunpack.c.l.b16 %v297
    %v338 = vunpack.c.l.b16 %v298
    %v339 = vunpack.c.h.b16 %v295
    %v340 = vunpack.c.h.b16 %v296
    %v341 = vunpack.c.h.b16 %v297
    %v342 = vunpack.c.h.b16 %v298
    %v343 = vunpack.c.l.b16 %v299
    %v344 = vunpack.c.l.b16 %v300
    %v345 = vunpack.c.l.b16 %v301
    %v346 = vunpack.c.l.b16 %v302
    %v347 = vunpack.c.h.b16 %v299
    %v348 = vunpack.c.h.b16 %v300
    %v349 = vunpack.c.h.b16 %v301
    %v350 = vunpack.c.h.b16 %v302
    %v351 = vpack.c.b16 %v320, %v319
    %v352 = vpack.c.b16 %v322, %v321
    %v353 = vpack.c.b16 %v324, %v323
    %v354 = vpack.c.b16 %v326, %v325
    %v355 = vpack.c.b16 %v328, %v327
    %v356 = vpack.c.b16 %v330, %v329
    %v357 = vpack.c.b16 %v332, %v331
    %v358 = vpack.c.b16 %v334, %v333
    %v359 = vpack.c.b16 %v336, %v335
    %v360 = vpack.c.b16 %v338, %v337
    %v361 = vpack.c.b16 %v340, %v339
    %v362 = vpack.c.b16 %v342, %v341
    %v363 = vpack.c.b16 %v344, %v343
    %v364 = vpack.c.b16 %v346, %v345
    %v365 = vpack.c.b16 %v348, %v347
    %v366 = vpack.c.b16 %v350, %v349
    %383 = vst [vmem:[#allocation5] sm:$0xff] %v351
    %384 = vst [vmem:[#allocation5 + $0x8] sm:$0xff] %v352
    %385 = vst [vmem:[#allocation5 + $0x10] sm:$0xff] %v353
    %386 = vst [vmem:[#allocation5 + $0x18] sm:$0xff] %v354
    %387 = vst [vmem:[#allocation5 + $0x20] sm:$0xff] %v355
    %388 = vst [vmem:[#allocation5 + $0x28] sm:$0xff] %v356
    %389 = vst [vmem:[#allocation5 + $0x30] sm:$0xff] %v357
    %390 = vst [vmem:[#allocation5 + $0x38] sm:$0xff] %v358
    %391 = vst [vmem:[#allocation5 + $0x40] sm:$0xff] %v359
    %392 = vst [vmem:[#allocation5 + $0x48] sm:$0xff] %v360
    %393 = vst [vmem:[#allocation5 + $0x50] sm:$0xff] %v361
    %394 = vst [vmem:[#allocation5 + $0x58] sm:$0xff] %v362
    %395 = vst [vmem:[#allocation5 + $0x60] sm:$0xff] %v363
    %396 = vst [vmem:[#allocation5 + $0x68] sm:$0xff] %v364
    %397 = vst [vmem:[#allocation5 + $0x70] sm:$0xff] %v365
    %398 = vst [vmem:[#allocation5 + $0x78] sm:$0xff] %v366
    // Predicated region
    $region18: #{tpu_custom_call.1} parent=1 // pred_check
      _
    $region19: #{tpu_custom_call.1} parent=1 // pred_check_branch
      %400 = sbr.rel (0) target = $region21
    $region20: #{tpu_custom_call.1} parent=1 // pred_region
      %s402 = ssub.s32 2048, 2048
      %403 = vsyncadd [#allocation4], %s402
      %s404 = sshll.u32 [#allocation5], 4
      %s405 = int_to_ptr.vmem [resolvable:$true] %s404
      %410 = dma.vmem_to_hbm [thread:$0]  %s405, 2048, %s3, [#allocation4], 256, 256, 16
    $region21: #{tpu_custom_call.1} parent=1 // pred_fallthru
      _
    // Predicated region
    $region22: #{tpu_custom_call.1} parent=1 // pred_check
      _
    $region23: #{tpu_custom_call.1} parent=1 // pred_check_branch
      %412 = sbr.rel (0) target = $region25
    $region24: #{tpu_custom_call.1} parent=1 // pred_region
      %413 = dma.done [#allocation4], 2048
    $region25: #{tpu_custom_call.1} parent=1 // pred_fallthru
      _
    %414 = vsyncpa [#allocation3], 1
    %415 = vsyncpa [#allocation4], 1

</llo_original>
